<compile_context>
chip_gen: v6e
topology: v6e:2x2x1
jax: 0.10.0
libtpu: 0.0.40
codegen_flags: <defaults>
</compile_context>

<pallas_src>
import jax
import jax.numpy as jnp
from jax.experimental import pallas as pl
from jax.experimental.pallas import tpu as pltpu

_LANE = 128
_SUBLANE = 8


def _round_up(x: int, m: int) -> int:
    return ((x + m - 1) // m) * m


def _is_v5() -> bool:
    """True iff the default device looks like a TPU v5 generation part."""
    try:
        kind = jax.devices()[0].device_kind.lower()
    except Exception:  # no devices / unusual backend: assume modern (no widen)
        return False
    return "v5" in kind


def _make_kernel(use_abs: bool, out_dtype, widen: bool):
    """Kernel body. Block shapes:
      x_ref    : (1, C, t_r, 128)
      attn_ref : (1, C, t_r, 128)
      norm_ref : (1, 1, t_r, 128)
    Channel reduction is over axis=1 (outer dim) -> pure VPU vmax of slabs.
    """

    def kernel(x_ref, attn_ref, norm_ref):
        x = x_ref[...]
        if widen:
            # v5e has no bf16 VPU/EUP path: widen the whole block once.
            x = x.astype(jnp.float32)
        m = jnp.abs(x) if use_abs else x
        norm = jnp.max(m, axis=1, keepdims=True)        # (1, 1, t_r, 128)
        norm = jnp.maximum(norm, 1.0)                   # single vmax clamp
        # Reciprocal on the tiny norm slab, always in f32 (cheap, accurate);
        # broadcast-multiply instead of per-element division.
        inv = 1.0 / norm.astype(jnp.float32)
        attn_ref[...] = (x * inv).astype(out_dtype)
        norm_ref[...] = norm.astype(out_dtype)

    return kernel


def norm_attn_map(attn_map: jax.Array, norm_type: str = "cossim"):
    """Pallas implementation of NormAttnMap.forward.

    attn_map: (B, C, H, W) float array (NCHW).
    Returns (attn, norm) with shapes (B, C, H, W) and (B, 1, H, W).
    """
    B, C, H, W = attn_map.shape
    dtype = attn_map.dtype
    itemsize = jnp.dtype(dtype).itemsize
    HW = H * W

    # ---- lane-dense spatial layout: (B, C, HW) -> (B, C, rows, 128) ----
    hw_pad = _round_up(HW, _LANE)
    rows = hw_pad // _LANE

    # Packed-sublane multiple: 8 (f32), 16 (bf16), 32 (int8/fp8).
    sub_mult = _SUBLANE * max(4 // itemsize, 1)

    # ---- spatial tile (in rows of 128 lanes) sized for VMEM ----
    # ~4 MiB input blocks amortize per-step overhead at v7x bandwidth while the
    # explicit vmem_limit below keeps double-buffered in+out traffic legal on
    # every generation (v5e 16 MiB scoped default, v7x 64 MiB physical).
    target_block_bytes = 4 * 1024 * 1024
    t_r = (target_block_bytes // max(C * _LANE * itemsize, 1)) // sub_mult * sub_mult
    t_r = max(sub_mult, t_r)
    if t_r >= rows:
        t_r = rows                      # full-extent block dim (always legal)

    # Keep >= 2 grid programs when possible so both v7x TensorCores get work.
    if B == 1 and rows > sub_mult and t_r >= rows:
        t_r = min(t_r, _round_up((rows + 1) // 2, sub_mult))

    n_spatial = pl.cdiv(rows, t_r)      # ragged last tile handled by Pallas

    x = attn_map.reshape(B, C, HW)
    if hw_pad != HW:
        x = jnp.pad(x, ((0, 0), (0, 0), (0, hw_pad - HW)))
    x = x.reshape(B, C, rows, _LANE)

    # Replicate the reference's exact branch condition (note the 'cosssim' typo):
    use_abs = norm_type == "cosssim"[:3] + "ssim"  # == "cosssim"
    widen = (dtype == jnp.bfloat16) and _is_v5()
    kernel = _make_kernel(use_abs, dtype, widen)

    # VMEM budget: double-buffered input + attn output + norm output blocks,
    # plus 25% margin and fixed headroom for compiler scratch.
    blk_in = C * t_r * _LANE * itemsize
    blk_norm = t_r * _LANE * itemsize
    needed = 2 * (2 * blk_in + blk_norm)
    vmem_limit = max(int(needed * 1.25) + (2 << 20), 16 << 20)

    attn, norm = pl.pallas_call(
        kernel,
        out_shape=(
            jax.ShapeDtypeStruct((B, C, rows, _LANE), dtype),
            jax.ShapeDtypeStruct((B, 1, rows, _LANE), dtype),
        ),
        grid=(B, n_spatial),
        in_specs=[
            pl.BlockSpec((1, C, t_r, _LANE), lambda b, s: (b, 0, s, 0)),
        ],
        out_specs=(
            pl.BlockSpec((1, C, t_r, _LANE), lambda b, s: (b, 0, s, 0)),
            pl.BlockSpec((1, 1, t_r, _LANE), lambda b, s: (b, 0, s, 0)),
        ),
        compiler_params=pltpu.CompilerParams(
            dimension_semantics=("parallel", "parallel"),
            vmem_limit_bytes=vmem_limit,
        ),
    )(x)

    # Drop spatial lane-padding and restore NCHW.
    attn = attn.reshape(B, C, hw_pad)[:, :, :HW].reshape(B, C, H, W)
    norm = norm.reshape(B, 1, hw_pad)[:, :, :HW].reshape(B, 1, H, W)
    return attn, norm


def _reference(attn_map, norm_type="cossim"):
    # Pure-JAX reference mirroring the PyTorch code (including the typo branch).
    if norm_type != "cosssim":
        norm = jnp.max(attn_map, axis=1, keepdims=True)
    else:
        norm = jnp.max(jnp.abs(attn_map), axis=1, keepdims=True)
    norm = jnp.where(norm <= 1.0, 1.0, norm)
    return attn_map / norm, norm


if __name__ == "__main__":
    key = jax.random.PRNGKey(0)
    B, C, H, W = 2, 4, 16, 16
    # Scale so some channel-maxes exceed 1 and some don't (exercises the clamp).
    attn_map = 3.0 * jax.random.normal(key, (B, C, H, W), dtype=jnp.float32)

    attn, norm = norm_attn_map(attn_map, norm_type="cossim")
    jax.block_until_ready((attn, norm))

    ref_attn, ref_norm = _reference(attn_map, norm_type="cossim")
    assert attn.shape == (B, C, H, W) and norm.shape == (B, 1, H, W)
    # attn uses x * (1/norm); a couple of ulps vs. x / norm, hence 1e-5 rtol.
    assert jnp.allclose(attn, ref_attn, atol=1e-6, rtol=1e-5)
    assert jnp.allclose(norm, ref_norm, atol=1e-6, rtol=1e-6)

    print("KERNEL_OK")
</pallas_src>

<mosaic_0001>
module attributes {stable_mosaic.version = 11 : i64} {
  func.func @kernel(%arg0: i32, %arg1: i32, %arg2: memref<1x4x2x128xf32, #tpu.memory_space<vmem>>, %arg3: memref<1x4x2x128xf32, #tpu.memory_space<vmem>>, %arg4: memref<1x1x2x128xf32, #tpu.memory_space<vmem>>) attributes {dimension_semantics = [#tpu.dimension_semantics<parallel>, #tpu.dimension_semantics<parallel>], iteration_bounds = array<i64: 2, 1>, scalar_prefetch = 0 : i64, scratch_operands = 0 : i64, tpu.core_type = #tpu.core_type<tc>, window_params = [{transform_indices = @transform_0, window_bounds = array<i64: 1, 4, 2, 128>}, {transform_indices = @transform_1, window_bounds = array<i64: 1, 4, 2, 128>}, {transform_indices = @transform_2, window_bounds = array<i64: 1, 1, 2, 128>}]} {
    %c0 = arith.constant 0 : index
    %c0_0 = arith.constant 0 : index
    %c0_1 = arith.constant 0 : index
    %c0_2 = arith.constant 0 : index
    %0 = vector.load %arg2[%c0, %c0_0, %c0_1, %c0_2] : memref<1x4x2x128xf32, #tpu.memory_space<vmem>>, vector<1x4x2x128xf32>
    %cst = arith.constant dense<0xFF800000> : vector<1x2x128xf32>
    %1 = vector.multi_reduction <maximumf>, %0, %cst [1] : vector<1x4x2x128xf32> to vector<1x2x128xf32>
    %2 = vector.shape_cast %1 : vector<1x2x128xf32> to vector<1x1x2x128xf32>
    %cst_3 = arith.constant 1.000000e+00 : f32
    %3 = vector.broadcast %cst_3 : f32 to vector<1x1x2x128xf32>
    %4 = arith.maximumf %2, %3 : vector<1x1x2x128xf32>
    %cst_4 = arith.constant 1.000000e+00 : f32
    %5 = vector.broadcast %cst_4 : f32 to vector<1x1x2x128xf32>
    %6 = arith.divf %5, %4 : vector<1x1x2x128xf32>
    %7 = vector.broadcast %6 : vector<1x1x2x128xf32> to vector<1x4x2x128xf32>
    %8 = arith.mulf %0, %7 : vector<1x4x2x128xf32>
    %c0_5 = arith.constant 0 : index
    %c0_6 = arith.constant 0 : index
    %c0_7 = arith.constant 0 : index
    %c0_8 = arith.constant 0 : index
    %9 = vector.load %arg3[%c0_5, %c0_6, %c0_7, %c0_8] : memref<1x4x2x128xf32, #tpu.memory_space<vmem>>, vector<1x4x2x128xf32>
    tpu.vector_store %arg3[%c0_5, %c0_6, %c0_7, %c0_8], %8 {strides = array<i32>} : memref<1x4x2x128xf32, #tpu.memory_space<vmem>>, vector<1x4x2x128xf32>,
    %c0_9 = arith.constant 0 : index
    %c0_10 = arith.constant 0 : index
    %c0_11 = arith.constant 0 : index
    %c0_12 = arith.constant 0 : index
    %10 = vector.load %arg4[%c0_9, %c0_10, %c0_11, %c0_12] : memref<1x1x2x128xf32, #tpu.memory_space<vmem>>, vector<1x1x2x128xf32>
    tpu.vector_store %arg4[%c0_9, %c0_10, %c0_11, %c0_12], %4 {strides = array<i32>} : memref<1x1x2x128xf32, #tpu.memory_space<vmem>>, vector<1x1x2x128xf32>,
    return
  }
  func.func @transform_0(%arg0: i32, %arg1: i32) -> (i32, i32, i32, i32) {
    %c0_i32 = arith.constant 0 : i32
    %c0_i32_0 = arith.constant 0 : i32
    %c0_i32_1 = arith.constant 0 : i32
    return %arg0, %c0_i32, %arg1, %c0_i32_0 : i32, i32, i32, i32
  }
  func.func @transform_1(%arg0: i32, %arg1: i32) -> (i32, i32, i32, i32) {
    %c0_i32 = arith.constant 0 : i32
    %c0_i32_0 = arith.constant 0 : i32
    %c0_i32_1 = arith.constant 0 : i32
    return %arg0, %c0_i32, %arg1, %c0_i32_0 : i32, i32, i32, i32
  }
  func.func @transform_2(%arg0: i32, %arg1: i32) -> (i32, i32, i32, i32) {
    %c0_i32 = arith.constant 0 : i32
    %c0_i32_0 = arith.constant 0 : i32
    %c0_i32_1 = arith.constant 0 : i32
    return %arg0, %c0_i32, %arg1, %c0_i32_0 : i32, i32, i32, i32
  }
}

</mosaic_0001>

<llo_original>
// kernel: tpu_custom_call.1
$region0: #{tpu_custom_call.1}
  #allocation0 [shape = 'u32[]', space=smem, size = 0x4, offset = 0x4, fixed_abs, tag = 'smem constant byte address 0x4 - core index']
  #allocation1 [shape = 'u32[144,128]{1,0:T(1,128)}', space=vmem, size = 0x12000, scoped, tag = 'internal scratch']
  %s0 = inlined_call_operand.hbm [shape: f32[2,4,2,128], index: 0, kind: input, shape index: {}]
  %s1 = inlined_call_operand.hbm [shape: f32[2,4,2,128], index: 1, kind: output, shape index: {0}]
  %s2 = inlined_call_operand.hbm [shape: f32[2,1,2,128], index: 2, kind: output, shape index: {1}]
  %3 = xla_tuple %s1, %s2
  %s4 = sld [smem:[#allocation0]]
  $region49: #{tpu_custom_call.1} parent=0
    _
  %s6 = ssub.s32 1, %s4
  %s7 = scalar_select 0, %s6, %s4
  $region1: #{tpu_custom_call.1} parent=0
    #allocation2 [shape = 'u8[8192]{0}', space=vmem, size = 0x2000, scoped, tag = 'input window, operand 0']
    #allocation3 [shape = 's32[2]{0}', space=sflag, size = 0x8, scoped, tag = 'scoped memory for tpu_custom_call.1']
    #allocation4 [shape = 's32[2]{0}', space=sflag, size = 0x8, scoped, tag = 'scoped memory for tpu_custom_call.1']
    #allocation5 [shape = 'u8[8192]{0}', space=vmem, size = 0x2000, scoped, tag = 'output window, operand 0']
    #allocation6 [shape = 'u8[2048]{0}', space=vmem, size = 0x800, scoped, tag = 'output window, operand 1']
    #allocation7 [shape = 's32[2]{0}', space=sflag, size = 0x8, scoped, tag = 'scoped memory for tpu_custom_call.1']
    %8 = vsyncpa [#allocation3], 0
    %s9 = scalar_lea.sflag [#allocation3], 1
    %10 = vsyncpa %s9, 0
    %11 = vsyncpa [#allocation4], 0
    %s12 = scalar_lea.sflag [#allocation4], 1
    %13 = vsyncpa %s12, 0
    %14 = vsyncpa [#allocation7], 0
    %s15 = scalar_lea.sflag [#allocation7], 1
    %16 = vsyncpa %s15, 0
    loop: start=0, step=1, limit=4
    $region2: #{tpu_custom_call.1} parent=1 // loop_pre_header
      _
    $region3: #{tpu_custom_call.1} parent=1 // loop_header
      %s18 = sphi 0, %s22
      %p19 = scmp.ge.s32.totalorder %s18, 4
      %s25 = sphi 0, %s37
      %s26 = sphi 0, %s33
      %s27 = sphi 0, %s25
      %s28 = sphi 0, %s26
      %s29 = sphi 0, %s27
      %s30 = sphi 0, %s28
      %s42 = sphi 0, %s44
      %s45 = sphi 0, %s42
      %s46 = sphi 0, %s45
      %s62 = sphi 0, %s46
      %s70 = sphi 0, %s72
      %s73 = sphi 0, %s70
      %s74 = sphi 0, %s73
      %s90 = sphi 0, %s74
      %s98 = sphi 0, %s100
      %s101 = sphi 0, %s98
      %s102 = sphi 0, %s101
      %s118 = sphi 0, %s102
    $region4: #{tpu_custom_call.1} parent=1 // loop_header_branch
      %21 = sbr.rel (%p19) target = $region8
    $region5: #{tpu_custom_call.1} parent=1 // loop_body
      %s23 = ssub.s32 %s18, 1
      %s24 = ssub.s32 %s18, 2
      %s31 = sadd.s32 1, %s26
      %p32 = scmp.ge.s32.totalorder %s31, 1
      %s33 = scalar_select %p32, 0, %s31
      %s34 = sadd.s32 1, %s25
      %s35 = scalar_select %p32, %s34, %s25
      %p36 = scmp.ge.s32.totalorder %s35, 2
      %s37 = scalar_select %p36, 0, %s35
      %s38 = ssub.s32 %s25, %s37
      %s39 = ssub.s32 %s26, %s33
      %s40 = sor.u32 %s38, %s39
      %p41 = scmp.eq.s32.totalorder %s40, 0
      %s43 = sadd.s32 %s42, 1
      %s44 = scalar_select %p41, %s42, %s43
      %p47 = pneg %p41
      %p48 = scmp.eq.s32.totalorder %s18, 1
      %p49 = por %p47, %p48
      %p50 = scmp.ne.s32.totalorder %s42, %s45
      %p51 = scmp.eq.s32.totalorder %s18, 0
      %p52 = por %p50, %p51
      %p53 = scmp.ne.s32.totalorder %s42, %s45
      %p54 = scmp.eq.s32.totalorder %s23, 1
      %p55 = por %p53, %p54
      %p56 = scmp.ne.s32.totalorder %s45, %s46
      %p57 = scmp.eq.s32.totalorder %s23, 0
      %p58 = por %p56, %p57
      %p59 = scmp.ne.s32.totalorder %s45, %s46
      %p60 = scmp.eq.s32.totalorder %s24, 1
      %p61 = por %p59, %p60
      %p63 = scmp.ne.s32.totalorder %s46, %s62
      %p64 = scmp.eq.s32.totalorder %s24, 0
      %p65 = por %p63, %p64
      %s66 = ssub.s32 %s25, %s37
      %s67 = ssub.s32 %s26, %s33
      %s68 = sor.u32 %s66, %s67
      %p69 = scmp.eq.s32.totalorder %s68, 0
      %s71 = sadd.s32 %s70, 1
      %s72 = scalar_select %p69, %s70, %s71
      %p75 = pneg %p69
      %p76 = scmp.eq.s32.totalorder %s18, 1
      %p77 = por %p75, %p76
      %p78 = scmp.ne.s32.totalorder %s70, %s73
      %p79 = scmp.eq.s32.totalorder %s18, 0
      %p80 = por %p78, %p79
      %p81 = scmp.ne.s32.totalorder %s70, %s73
      %p82 = scmp.eq.s32.totalorder %s23, 1
      %p83 = por %p81, %p82
      %p84 = scmp.ne.s32.totalorder %s73, %s74
      %p85 = scmp.eq.s32.totalorder %s23, 0
      %p86 = por %p84, %p85
      %p87 = scmp.ne.s32.totalorder %s73, %s74
      %p88 = scmp.eq.s32.totalorder %s24, 1
      %p89 = por %p87, %p88
      %p91 = scmp.ne.s32.totalorder %s74, %s90
      %p92 = scmp.eq.s32.totalorder %s24, 0
      %p93 = por %p91, %p92
      %s94 = ssub.s32 %s25, %s37
      %s95 = ssub.s32 %s26, %s33
      %s96 = sor.u32 %s94, %s95
      %p97 = scmp.eq.s32.totalorder %s96, 0
      %s99 = sadd.s32 %s98, 1
      %s100 = scalar_select %p97, %s98, %s99
      %p103 = pneg %p97
      %p104 = scmp.eq.s32.totalorder %s18, 1
      %p105 = por %p103, %p104
      %p106 = scmp.ne.s32.totalorder %s98, %s101
      %p107 = scmp.eq.s32.totalorder %s18, 0
      %p108 = por %p106, %p107
      %p109 = scmp.ne.s32.totalorder %s98, %s101
      %p110 = scmp.eq.s32.totalorder %s23, 1
      %p111 = por %p109, %p110
      %p112 = scmp.ne.s32.totalorder %s101, %s102
      %p113 = scmp.eq.s32.totalorder %s23, 0
      %p114 = por %p112, %p113
      %p115 = scmp.ne.s32.totalorder %s101, %s102
      %p116 = scmp.eq.s32.totalorder %s24, 1
      %p117 = por %p115, %p116
      %p119 = scmp.ne.s32.totalorder %s102, %s118
      %p120 = scmp.eq.s32.totalorder %s24, 0
      %p121 = por %p119, %p120
      %p122 = scmp.le.s32.totalorder 1, %s18
      %p123 = scmp.lt.s32.totalorder %s18, 3
      %p124 = pnand %p122, %p123
      %p125 = pneg %p124
      // Predicated region
      $region9: #{tpu_custom_call.1} parent=5 // pred_check
        _
      $region10: #{tpu_custom_call.1} parent=5 // pred_check_branch
        %127 = sbr.rel (%p124) target = $region12
      $region11: #{tpu_custom_call.1} parent=5 // pred_region
        %s128 = ssub.s32 %s18, 1
      $region12: #{tpu_custom_call.1} parent=5 // pred_fallthru
        _
      %p129 = scmp.lt.s32.totalorder %s18, 2
      // Predicated region
      $region13: #{tpu_custom_call.1} parent=5 // pred_check
        %p130 = pneg %p129
      $region14: #{tpu_custom_call.1} parent=5 // pred_check_branch
        %132 = sbr.rel (%p130) target = $region16
      $region15: #{tpu_custom_call.1} parent=5 // pred_region
        // Predicated region
        $region17: #{tpu_custom_call.1} parent=15 // pred_check
          %p133 = pneg %p52
        $region18: #{tpu_custom_call.1} parent=15 // pred_check_branch
          %135 = sbr.rel (%p133) target = $region20
        $region19: #{tpu_custom_call.1} parent=15 // pred_region
          %s136 = sand.u32 %s42, 1
          %s137 = scalar_lea.sflag [#allocation3], %s136
          %s138 = sand.u32 %s42, 1
          %s139 = smul.addr %s138, 8
          %s140 = scalar_lea.vmem [#allocation2], %s139
          %s142 = ssub.s32 128, 128
          %143 = vsyncadd %s137, %s142
          %s144 = smul.addr %s25, 4
          %s145 = sadd.s32 %s26, %s144
          %s146 = smul.addr %s145, 32
          %s147 = scalar_lea.hbm %s0, %s146
          %s148 = sshll.u32 %s140, 4
          %s149 = int_to_ptr.vmem [resolvable:$true] %s148
          %154 = dma.hbm_to_vmem [thread:$0]  %s147, 128, %s149, %s137, 32, 32, 2
        $region20: #{tpu_custom_call.1} parent=15 // pred_fallthru
          _
      $region16: #{tpu_custom_call.1} parent=5 // pred_fallthru
        _
      %p155 = scmp.le.s32.totalorder 1, %s18
      %p156 = scmp.lt.s32.totalorder %s18, 3
      %p157 = pnand %p155, %p156
      %p158 = pneg %p157
      // Predicated region
      $region21: #{tpu_custom_call.1} parent=5 // pred_check
        _
      $region22: #{tpu_custom_call.1} parent=5 // pred_check_branch
        %160 = sbr.rel (%p157) target = $region24
      $region23: #{tpu_custom_call.1} parent=5 // pred_region
        %s161 = ssub.s32 %s18, 1
        %s162 = sand.u32 %s45, 1
        %s163 = scalar_lea.sflag [#allocation3], %s162
        %s164 = sand.u32 %s45, 1
        %s165 = smul.addr %s164, 8
        %s166 = scalar_lea.vmem [#allocation2], %s165
        // Predicated region
        $region25: #{tpu_custom_call.1} parent=23 // pred_check
          %p167 = pneg %p58
        $region26: #{tpu_custom_call.1} parent=23 // pred_check_branch
          %169 = sbr.rel (%p167) target = $region28
        $region27: #{tpu_custom_call.1} parent=23 // pred_region
          %170 = dma.done %s163, 128
        $region28: #{tpu_custom_call.1} parent=23 // pred_fallthru
          _
        %s171 = sand.u32 %s45, 1
        %s172 = scalar_lea.sflag [#allocation3], %s171
        %s173 = sand.u32 %s45, 1
        %s174 = smul.addr %s173, 8
        %s175 = scalar_lea.vmem [#allocation2], %s174
        %p176 = pneg %p58
        %p177 = pneg %p55
        %p178 = pneg %p86
        %p179 = pneg %p83
        %s180 = sand.u32 %s73, 1
        %s181 = scalar_lea.sflag [#allocation4], %s180
        %s182 = sand.u32 %s73, 1
        %s183 = smul.addr %s182, 8
        %s184 = scalar_lea.vmem [#allocation5], %s183
        %p185 = pneg %p114
        %p186 = pneg %p111
        %s187 = sand.u32 %s101, 1
        %s188 = scalar_lea.sflag [#allocation7], %s187
        %s189 = sand.u32 %s101, 1
        %s190 = smul.addr %s189, 2
        %s191 = scalar_lea.vmem [#allocation6], %s190
        %v192 = vld [vmem:[%s166] sm:$0x3]
        %v193 = vld [vmem:[%s166 + $0x2] sm:$0x3]
        %v194 = vld [vmem:[%s166 + $0x4] sm:$0x3]
        %v195 = vld [vmem:[%s166 + $0x6] sm:$0x3]
        %vm196 = vcmask 1041408
        %v197 = vsel %vm196, %v192, -inf
        %v198 = vsel %vm196, %v193, -inf
        %v199 = vsel %vm196, %v194, -inf
        %v200 = vsel %vm196, %v195, -inf
        %v201 = vmax.f32 %v197, %v198
        %v202 = vmax.f32 %v199, %v200
        %v203 = vmax.f32 %v201, %v202
        %v204 = vmax.f32 %v203, 1.0
        %v205 = vrcp.pop %v204
        %v206 = vmul.f32 1.0, %v205
        %v207 = vmul.f32 %v192, %v206
        %v208 = vmul.f32 %v193, %v206
        %v209 = vmul.f32 %v194, %v206
        %v210 = vmul.f32 %v195, %v206
        %211 = vst [vmem:[%s184] sm:$0x3] %v207
        %212 = vst [vmem:[%s184 + $0x2] sm:$0x3] %v208
        %213 = vst [vmem:[%s184 + $0x4] sm:$0x3] %v209
        %214 = vst [vmem:[%s184 + $0x6] sm:$0x3] %v210
        %215 = vst [vmem:[%s191] sm:$0x3] %v204
        %s216 = sand.u32 %s73, 1
        %s217 = scalar_lea.sflag [#allocation4], %s216
        %s218 = sand.u32 %s73, 1
        %s219 = smul.addr %s218, 8
        %s220 = scalar_lea.vmem [#allocation5], %s219
        %s221 = sand.u32 %s101, 1
        %s222 = scalar_lea.sflag [#allocation7], %s221
        %s223 = sand.u32 %s101, 1
        %s224 = smul.addr %s223, 2
        %s225 = scalar_lea.vmem [#allocation6], %s224
        // Predicated region
        $region29: #{tpu_custom_call.1} parent=23 // pred_check
          %p226 = pneg %p83
        $region30: #{tpu_custom_call.1} parent=23 // pred_check_branch
          %228 = sbr.rel (%p226) target = $region32
        $region31: #{tpu_custom_call.1} parent=23 // pred_region
          %s230 = ssub.s32 128, 128
          %231 = vsyncadd %s217, %s230
          %s232 = smul.addr %s27, 4
          %s233 = sadd.s32 %s28, %s232
          %s234 = smul.addr %s233, 32
          %s235 = scalar_lea.hbm %s1, %s234
          %s236 = sshll.u32 %s220, 4
          %s237 = int_to_ptr.vmem [resolvable:$true] %s236
          %242 = dma.vmem_to_hbm [thread:$0]  %s237, 128, %s235, %s217, 32, 32, 2
        $region32: #{tpu_custom_call.1} parent=23 // pred_fallthru
          _
        // Predicated region
        $region33: #{tpu_custom_call.1} parent=23 // pred_check
          %p243 = pneg %p111
        $region34: #{tpu_custom_call.1} parent=23 // pred_check_branch
          %245 = sbr.rel (%p243) target = $region36
        $region35: #{tpu_custom_call.1} parent=23 // pred_region
          %s247 = ssub.s32 32, 32
          %248 = vsyncadd %s222, %s247
          %s249 = sadd.s32 %s28, %s27
          %s250 = smul.addr %s249, 32
          %s251 = scalar_lea.hbm %s2, %s250
          %s253 = sshll.u32 %s225, 4
          %s254 = int_to_ptr.vmem [resolvable:$true] %s253
          %256 = dma.vmem_to_hbm [thread:$0]  %s254, 32, %s251, %s222
        $region36: #{tpu_custom_call.1} parent=23 // pred_fallthru
          _
      $region24: #{tpu_custom_call.1} parent=5 // pred_fallthru
        _
      %p257 = scmp.le.s32.totalorder 2, %s18
      // Predicated region
      $region37: #{tpu_custom_call.1} parent=5 // pred_check
        %p258 = pneg %p257
      $region38: #{tpu_custom_call.1} parent=5 // pred_check_branch
        %260 = sbr.rel (%p258) target = $region40
      $region39: #{tpu_custom_call.1} parent=5 // pred_region
        %s261 = ssub.s32 %s18, 2
        // Predicated region
        $region41: #{tpu_custom_call.1} parent=39 // pred_check
          %p262 = pneg %p89
        $region42: #{tpu_custom_call.1} parent=39 // pred_check_branch
          %264 = sbr.rel (%p262) target = $region44
        $region43: #{tpu_custom_call.1} parent=39 // pred_region
          %s265 = sand.u32 %s74, 1
          %s266 = scalar_lea.sflag [#allocation4], %s265
          %s267 = sand.u32 %s74, 1
          %s268 = smul.addr %s267, 8
          %s269 = scalar_lea.vmem [#allocation5], %s268
          %270 = dma.done %s266, 128
        $region44: #{tpu_custom_call.1} parent=39 // pred_fallthru
          _
        // Predicated region
        $region45: #{tpu_custom_call.1} parent=39 // pred_check
          %p271 = pneg %p117
        $region46: #{tpu_custom_call.1} parent=39 // pred_check_branch
          %273 = sbr.rel (%p271) target = $region48
        $region47: #{tpu_custom_call.1} parent=39 // pred_region
          %s274 = sand.u32 %s102, 1
          %s275 = scalar_lea.sflag [#allocation7], %s274
          %s276 = sand.u32 %s102, 1
          %s277 = smul.addr %s276, 2
          %s278 = scalar_lea.vmem [#allocation6], %s277
          %279 = dma.done %s275, 32
        $region48: #{tpu_custom_call.1} parent=39 // pred_fallthru
          _
      $region40: #{tpu_custom_call.1} parent=5 // pred_fallthru
        _
    $region6: #{tpu_custom_call.1} parent=1 // loop_footer
      %s22 = sadd.s32 1, %s18
    $region7: #{tpu_custom_call.1} parent=1 // loop_footer_branch
      %17 = sbr.rel target = $region3
    $region8: #{tpu_custom_call.1} parent=1 // loop_exit
      _
    %280 = vsyncpa [#allocation3], 1
    %s281 = scalar_lea.sflag [#allocation3], 1
    %282 = vsyncpa %s281, 1
    %283 = vsyncpa [#allocation4], 1
    %s284 = scalar_lea.sflag [#allocation4], 1
    %285 = vsyncpa %s284, 1
    %286 = vsyncpa [#allocation7], 1
    %s287 = scalar_lea.sflag [#allocation7], 1
    %288 = vsyncpa %s287, 1

</llo_original>
